<compile_context>
chip_gen: v6e
topology: v6e:2x2x1
jax: 0.10.0
libtpu: 0.0.40
codegen_flags: <defaults>
</compile_context>

<pallas_src>
import functools

import jax
import jax.numpy as jnp
from jax.experimental import pallas as pl
from jax.experimental.pallas import tpu as pltpu


def cnn_kernel(x_ref, w_ref, b_ref, o_ref, *, kernel_size, valid_len):
    """Fused Conv1d + bias -> ReLU -> max over time for one batch tile.

    x_ref : (B_TILE, L_pad, C_in)     f32  (time on sublanes, channels on lanes)
    w_ref : (C_in*K, C_out)           f32  (im2col weight, k-major / c-minor rows)
    b_ref : (1, C_out)                f32
    o_ref : (B_TILE, C_out)           f32  (sublane/lane-dense output slab)
    """
    K = kernel_size
    x = x_ref[...]                                   # (B, L_pad, C_in)
    B, L_pad, C_in = x.shape
    Lp = L_pad - K + 1                               # padded output length, Lp % 8 == 0
    C_out = o_ref.shape[-1]

    # im2col: K time-shifted copies of x concatenated on the lane axis,
    # column index = k*C_in + c, matching the wrapper's weight layout.
    pieces = [x[:, k:k + Lp, :] for k in range(K)]
    x2 = jnp.concatenate(pieces, axis=-1)            # (B, Lp, K*C_in)
    # Lp is a multiple of 8, so this merge is sublane-tile aligned (no relayout).
    x2 = x2.reshape(B * Lp, K * C_in)                # M = B*Lp rows

    # One tall MXU matmul for the whole batch tile (f32 accumulation);
    # bias is a single broadcasted VPU add; ReLU is one VPU max.
    acc = jnp.dot(x2, w_ref[...], preferred_element_type=jnp.float32)
    acc = jnp.maximum(acc + b_ref[...], 0.0)         # (M, C_out)

    # Zero the time-padding rows before the max (safe: ReLU output >= 0 and the
    # true per-batch max is >= 0, so extra zeros never change the result).
    if valid_len != Lp:
        row = jax.lax.broadcasted_iota(jnp.int32, (B * Lp, 1), 0)
        acc = jnp.where(row % Lp < valid_len, acc, 0.0)

    # Per-batch max over time; (B, C_out) stores straight into o_ref.
    acc = acc.reshape(B, Lp, C_out)                  # split is tile-aligned (Lp % 8 == 0)
    o_ref[...] = jnp.max(acc, axis=1).astype(o_ref.dtype)


def _pick_batch_tile(N, L_pad, L_out_pad, C_in, C_out, K):
    """Choose how many batch elements to process per grid step."""
    # M = b * L_out_pad >= 256 rows per MXU matmul (v6e/v7x pass width; also a
    # multiple of 128 for v5e once b is rounded, since L_out_pad % 8 == 0).
    target_mxu = pl.cdiv(256, L_out_pad)
    # Aim for >= 64 KiB of input per grid-step DMA (tiny tiles waste HBM BW).
    target_dma = pl.cdiv(64 * 1024, 4 * L_pad * C_in)
    # Conservative per-batch-element VMEM bytes (f32): double-buffered input
    # tile + im2col intermediate (x2 headroom for copies) + f32 accumulator.
    per_b = 4 * (2 * L_pad * C_in
                 + 2 * L_out_pad * K * C_in
                 + 2 * L_out_pad * C_out)
    cap = max(1, (16 * 1024 * 1024) // per_b)        # keep working set well under v7x's 64 MiB
    b = max(1, min(N, max(target_mxu, target_dma), cap))
    if b < N:
        b = ((b + 7) // 8) * 8                       # sublane-aligned output block
    return b


def cnn_forward(x, w, b, *, b_tile=None):
    """x: (N, C_in, L) f32; w: (C_out, C_in, K) f32; b: (C_out,) f32 -> (N, C_out)."""
    N, C_in, L = x.shape
    C_out, _, K = w.shape
    L_out = L - K + 1
    assert L_out >= 1, "sequence length must be >= kernel_size"

    # Wrapper-side layout plumbing (free):
    #   x -> (N, L, C_in); time zero-padded so the padded output length is a
    #   multiple of 8 (makes the in-kernel reshapes layout-preserving).
    L_out_pad = ((L_out + 7) // 8) * 8
    L_pad = L_out_pad + K - 1
    x_nlc = jnp.transpose(x, (0, 2, 1))                         # (N, L, C_in)
    if L_pad != L:
        x_nlc = jnp.pad(x_nlc, ((0, 0), (0, L_pad - L), (0, 0)))

    #   w -> (C_in*K, C_out): rows ordered (k-major, c-minor) to match the
    #   in-kernel im2col; bias kept separate (post-matmul add).
    w2 = jnp.transpose(w, (2, 1, 0)).reshape(K * C_in, C_out)   # [k*C_in + c, o] = w[o, c, k]
    b2 = b.reshape(1, C_out)

    # Batch tiling: B_TILE elements per grid step, batch padded to a multiple.
    if b_tile is None:
        b_tile = _pick_batch_tile(N, L_pad, L_out_pad, C_in, C_out, K)
    elif b_tile < N:
        b_tile = ((b_tile + 7) // 8) * 8
    b_tile = min(b_tile, max(N, 1)) if b_tile <= N else b_tile
    num_steps = pl.cdiv(N, b_tile)
    n_pad = num_steps * b_tile
    if n_pad != N:
        x_nlc = jnp.pad(x_nlc, ((0, n_pad - N), (0, 0), (0, 0)))

    kernel = functools.partial(cnn_kernel, kernel_size=K, valid_len=L_out)
    out = pl.pallas_call(
        kernel,
        out_shape=jax.ShapeDtypeStruct((n_pad, C_out), x.dtype),
        grid=(num_steps,),
        in_specs=[
            pl.BlockSpec((b_tile, L_pad, C_in), lambda n: (n, 0, 0)),   # batch tile / step
            pl.BlockSpec((K * C_in, C_out), lambda n: (0, 0)),          # weights, resident
            pl.BlockSpec((1, C_out), lambda n: (0, 0)),                 # bias, resident
        ],
        out_specs=pl.BlockSpec((b_tile, C_out), lambda n: (n, 0)),      # dense output slab
        compiler_params=pltpu.CompilerParams(
            dimension_semantics=("parallel",),       # shard batch tiles across TCs on v7x
            vmem_limit_bytes=48 * 1024 * 1024),      # above v5e's 16 MiB scoped default
    )(x_nlc, w2, b2)
    return out[:N]


def ref_forward(x, w, b):
    """Pure-JAX reference: torch.max(relu(conv1d(x)), dim=-1)[0]."""
    N, C_in, L = x.shape
    C_out, _, K = w.shape
    L_out = L - K + 1
    cols = jnp.stack([x[:, :, k:k + L_out] for k in range(K)], axis=-1)  # (N,C_in,L_out,K)
    conv = jnp.einsum("nclk,ock->nol", cols, w) + b[None, :, None]       # (N,C_out,L_out)
    return jnp.max(jax.nn.relu(conv), axis=-1)                           # (N,C_out)


def _make_inputs(key, N, C_in, L, C_out, K):
    kx, kw, kb = jax.random.split(key, 3)
    x = jax.random.normal(kx, (N, C_in, L), dtype=jnp.float32)
    # PyTorch Conv1d default init: uniform(-bound, bound), bound = 1/sqrt(C_in*K).
    bound = 1.0 / jnp.sqrt(jnp.float32(C_in * K))
    w = jax.random.uniform(kw, (C_out, C_in, K), dtype=jnp.float32,
                           minval=-bound, maxval=bound)
    b = jax.random.uniform(kb, (C_out,), dtype=jnp.float32,
                           minval=-bound, maxval=bound)
    return x, w, b


if __name__ == "__main__":
    key = jax.random.PRNGKey(0)
    k1, k2 = jax.random.split(key)

    # Case 1: small deterministic shapes consistent with the module's forward
    # (single grid step, time padded 12 -> 16 output positions).
    N, C_in, L, C_out, K = 2, 4, 16, 8, 5
    x, w, b = _make_inputs(k1, N, C_in, L, C_out, K)
    out = jax.block_until_ready(cnn_forward(x, w, b))
    expected = ref_forward(x, w, b)
    assert out.shape == (N, C_out), out.shape
    assert jnp.allclose(out, expected, atol=1e-5, rtol=1e-5), "mismatch vs reference (case 1)"

    # Case 2: exercises batch padding, multi-step grid and the time-pad mask.
    N2, C_in2, L2, C_out2, K2 = 20, 3, 23, 6, 5
    x2, w2_, b2_ = _make_inputs(k2, N2, C_in2, L2, C_out2, K2)
    out2 = jax.block_until_ready(cnn_forward(x2, w2_, b2_, b_tile=8))
    expected2 = ref_forward(x2, w2_, b2_)
    assert out2.shape == (N2, C_out2), out2.shape
    assert jnp.allclose(out2, expected2, atol=1e-5, rtol=1e-5), "mismatch vs reference (case 2)"

    print("KERNEL_OK")
</pallas_src>

<mosaic_0001>
module attributes {stable_mosaic.version = 11 : i64} {
  func.func @cnn_kernel(%arg0: i32, %arg1: memref<2x20x4xf32, #tpu.memory_space<vmem>>, %arg2: memref<20x8xf32, #tpu.memory_space<vmem>>, %arg3: memref<1x8xf32, #tpu.memory_space<vmem>>, %arg4: memref<2x8xf32, #tpu.memory_space<vmem>>) attributes {dimension_semantics = [#tpu.dimension_semantics<parallel>], iteration_bounds = array<i64: 1>, scalar_prefetch = 0 : i64, scratch_operands = 0 : i64, tpu.core_type = #tpu.core_type<tc>, window_params = [{transform_indices = @transform_0, window_bounds = array<i64: 2, 20, 4>}, {pipeline_mode = #tpu.pipeline_mode<synchronous>, transform_indices = @transform_1, window_bounds = array<i64: 20, 8>}, {pipeline_mode = #tpu.pipeline_mode<synchronous>, transform_indices = @transform_2, window_bounds = array<i64: 1, 8>}, {transform_indices = @transform_3, window_bounds = array<i64: 2, 8>}]} {
    %c0 = arith.constant 0 : index
    %c0_0 = arith.constant 0 : index
    %c0_1 = arith.constant 0 : index
    %0 = vector.load %arg1[%c0, %c0_0, %c0_1] : memref<2x20x4xf32, #tpu.memory_space<vmem>>, vector<2x20x4xf32>
    %1 = vector.extract_strided_slice %0 {offsets = [0, 0, 0], sizes = [2, 16, 4], strides = [1, 1, 1]} : vector<2x20x4xf32> to vector<2x16x4xf32>
    %2 = vector.extract_strided_slice %0 {offsets = [0, 1, 0], sizes = [2, 16, 4], strides = [1, 1, 1]} : vector<2x20x4xf32> to vector<2x16x4xf32>
    %3 = vector.extract_strided_slice %0 {offsets = [0, 2, 0], sizes = [2, 16, 4], strides = [1, 1, 1]} : vector<2x20x4xf32> to vector<2x16x4xf32>
    %4 = vector.extract_strided_slice %0 {offsets = [0, 3, 0], sizes = [2, 16, 4], strides = [1, 1, 1]} : vector<2x20x4xf32> to vector<2x16x4xf32>
    %5 = vector.extract_strided_slice %0 {offsets = [0, 4, 0], sizes = [2, 16, 4], strides = [1, 1, 1]} : vector<2x20x4xf32> to vector<2x16x4xf32>
    %6 = tpu.concatenate %1, %2, %3, %4, %5 in 2 : vector<2x16x4xf32>, vector<2x16x4xf32>, vector<2x16x4xf32>, vector<2x16x4xf32>, vector<2x16x4xf32> -> vector<2x16x20xf32>
    %7 = vector.shape_cast %6 : vector<2x16x20xf32> to vector<32x20xf32>
    %c0_2 = arith.constant 0 : index
    %c0_3 = arith.constant 0 : index
    %8 = vector.load %arg2[%c0_2, %c0_3] : memref<20x8xf32, #tpu.memory_space<vmem>>, vector<20x8xf32>
    %cst = arith.constant dense<0.000000e+00> : vector<32x8xf32>
    %9 = tpu.matmul %7, %8, %cst {dimension_numbers = #tpu.dot_dimension_numbers<[1], [0], [0], [1], [0, 0, 1, 1], [], []>} : vector<32x20xf32>, vector<20x8xf32>, vector<32x8xf32> -> vector<32x8xf32>
    %c0_4 = arith.constant 0 : index
    %c0_5 = arith.constant 0 : index
    %10 = vector.load %arg3[%c0_4, %c0_5] : memref<1x8xf32, #tpu.memory_space<vmem>>, vector<1x8xf32>
    %11 = vector.broadcast %10 : vector<1x8xf32> to vector<32x8xf32>
    %12 = arith.addf %9, %11 : vector<32x8xf32>
    %cst_6 = arith.constant 0.000000e+00 : f32
    %13 = vector.broadcast %cst_6 : f32 to vector<32x8xf32>
    %14 = arith.maximumf %12, %13 : vector<32x8xf32>
    %15 = tpu.iota {dimensions = array<i32: 0>} : vector<32x1xi32>
    %c16_i32 = arith.constant 16 : i32
    %c0_i32 = arith.constant 0 : i32
    %16 = arith.cmpi eq, %c16_i32, %c0_i32 : i32
    %c1_i32 = arith.constant 1 : i32
    %17 = arith.select %16, %c1_i32, %c16_i32 : i32
    %18 = vector.broadcast %17 : i32 to vector<32x1xi32>
    %19 = arith.remsi %15, %18 : vector<32x1xi32>
    %c0_i32_7 = arith.constant 0 : i32
    %20 = vector.broadcast %c0_i32_7 : i32 to vector<32x1xi32>
    %21 = arith.cmpi ne, %19, %20 : vector<32x1xi32>
    %c0_i32_8 = arith.constant 0 : i32
    %22 = vector.broadcast %c0_i32_8 : i32 to vector<32x1xi32>
    %23 = arith.cmpi slt, %19, %22 : vector<32x1xi32>
    %c0_i32_9 = arith.constant 0 : i32
    %24 = arith.cmpi slt, %17, %c0_i32_9 : i32
    %25 = vector.broadcast %24 : i1 to vector<32x1xi1>
    %26 = vector.broadcast %25 : vector<32x1xi1> to vector<32x1xi1>
    %27 = arith.xori %23, %26 : vector<32x1xi1>
    %28 = arith.andi %27, %21 : vector<32x1xi1>
    %29 = vector.broadcast %17 : i32 to vector<32x1xi32>
    %30 = arith.addi %19, %29 : vector<32x1xi32>
    %31 = arith.select %28, %30, %19 : vector<32x1xi1>, vector<32x1xi32>
    %c12_i32 = arith.constant 12 : i32
    %32 = vector.broadcast %c12_i32 : i32 to vector<32x1xi32>
    %33 = arith.cmpi slt, %31, %32 : vector<32x1xi32>
    %cst_10 = arith.constant 0.000000e+00 : f32
    %34 = vector.shape_cast %33 : vector<32x1xi1> to vector<32x1xi1>
    %35 = vector.broadcast %34 : vector<32x1xi1> to vector<32x8xi1>
    %36 = vector.broadcast %cst_10 : f32 to vector<32x8xf32>
    %37 = arith.select %35, %14, %36 : vector<32x8xi1>, vector<32x8xf32>
    %38 = vector.shape_cast %37 : vector<32x8xf32> to vector<2x16x8xf32>
    %cst_11 = arith.constant dense<0xFF800000> : vector<2x8xf32>
    %39 = vector.multi_reduction <maximumf>, %38, %cst_11 [1] : vector<2x16x8xf32> to vector<2x8xf32>
    %c0_12 = arith.constant 0 : index
    %c0_13 = arith.constant 0 : index
    %40 = vector.load %arg4[%c0_12, %c0_13] : memref<2x8xf32, #tpu.memory_space<vmem>>, vector<2x8xf32>
    tpu.vector_store %arg4[%c0_12, %c0_13], %39 {strides = array<i32>} : memref<2x8xf32, #tpu.memory_space<vmem>>, vector<2x8xf32>,
    return
  }
  func.func @transform_0(%arg0: i32) -> (i32, i32, i32) {
    %c0_i32 = arith.constant 0 : i32
    %c0_i32_0 = arith.constant 0 : i32
    %c0_i32_1 = arith.constant 0 : i32
    return %arg0, %c0_i32, %c0_i32_0 : i32, i32, i32
  }
  func.func @transform_1(%arg0: i32) -> (i32, i32) {
    %c0_i32 = arith.constant 0 : i32
    %c0_i32_0 = arith.constant 0 : i32
    %c0_i32_1 = arith.constant 0 : i32
    return %c0_i32, %c0_i32_0 : i32, i32
  }
  func.func @transform_2(%arg0: i32) -> (i32, i32) {
    %c0_i32 = arith.constant 0 : i32
    %c0_i32_0 = arith.constant 0 : i32
    %c0_i32_1 = arith.constant 0 : i32
    return %c0_i32, %c0_i32_0 : i32, i32
  }
  func.func @transform_3(%arg0: i32) -> (i32, i32) {
    %c0_i32 = arith.constant 0 : i32
    %c0_i32_0 = arith.constant 0 : i32
    return %arg0, %c0_i32 : i32, i32
  }
}

</mosaic_0001>

<llo_original>
// kernel: tpu_custom_call.1
$region0: #{tpu_custom_call.1}
  #allocation0 [shape = 'u32[]', space=smem, size = 0x4, offset = 0x4, fixed_abs, tag = 'smem constant byte address 0x4 - core index']
  #allocation1 [shape = 'u32[144,128]{1,0:T(1,128)}', space=vmem, size = 0x12000, scoped, tag = 'internal scratch']
  %s0 = inlined_call_operand.vmem [shape: f32[2,20,4], index: 0, kind: input, shape index: {}]
  %s1 = inlined_call_operand.vmem [shape: f32[20,8], index: 1, kind: input, shape index: {}]
  %s2 = inlined_call_operand.vmem [shape: f32[1,8], index: 2, kind: input, shape index: {}]
  %s3 = inlined_call_operand.hbm [shape: f32[2,8], index: 3, kind: output, shape index: {}]
  %s4 = sld [smem:[#allocation0]]
  $region22: #{tpu_custom_call.1} parent=0
    _
  %s6 = ssub.s32 1, %s4
  %s7 = scalar_select 0, %s6, %s4
  $region1: #{tpu_custom_call.1} parent=0
    #allocation2 [shape = 'u8[1024]{0}', space=vmem, size = 0x400, scoped, tag = 'output window, operand 0, single buffered']
    #allocation3 [shape = 's32[1]{0}', space=sflag, size = 0x4, scoped, tag = 'scoped memory for tpu_custom_call.1']
    %8 = vsyncpa [#allocation3], 0
    // Predicated region
    $region2: #{tpu_custom_call.1} parent=1 // pred_check
      _
    $region3: #{tpu_custom_call.1} parent=1 // pred_check_branch
      %10 = sbr.rel (0) target = $region5
    $region4: #{tpu_custom_call.1} parent=1 // pred_region
      _
    $region5: #{tpu_custom_call.1} parent=1 // pred_fallthru
      _
    // Predicated region
    $region6: #{tpu_custom_call.1} parent=1 // pred_check
      _
    $region7: #{tpu_custom_call.1} parent=1 // pred_check_branch
      %12 = sbr.rel (0) target = $region9
    $region8: #{tpu_custom_call.1} parent=1 // pred_region
      _
    $region9: #{tpu_custom_call.1} parent=1 // pred_fallthru
      _
    // Predicated region
    $region10: #{tpu_custom_call.1} parent=1 // pred_check
      _
    $region11: #{tpu_custom_call.1} parent=1 // pred_check_branch
      %14 = sbr.rel (0) target = $region13
    $region12: #{tpu_custom_call.1} parent=1 // pred_region
      _
    $region13: #{tpu_custom_call.1} parent=1 // pred_fallthru
      _
    %v15 = vld [vmem:[%s0] sm:$0xff]
    %v16 = vld [vmem:[%s0 + $0x8] sm:$0xff]
    %v17 = vld [vmem:[%s0 + $0x10] sm:$0xf]
    %v18 = vld [vmem:[%s0 + $0x18] sm:$0xff]
    %v19 = vld [vmem:[%s0 + $0x20] sm:$0xff]
    %v20 = vld [vmem:[%s0 + $0x28] sm:$0xf]
    %vm27 = vcmask 1046528
    %v28 = vrot.slane %v15, 1
    %v29 = vrot.slane %v16, 1
    %v30 = vsel %vm27, %v28, %v29
    %v31 = vrot.slane %v17, 1
    %v32 = vsel %vm27, %v29, %v31
    %v33 = vrot.slane %v18, 1
    %v34 = vrot.slane %v19, 1
    %v35 = vsel %vm27, %v33, %v34
    %v36 = vrot.slane %v20, 1
    %v37 = vsel %vm27, %v34, %v36
    %38 = vrot.lane.b32.xlu0 %v30, 4
    %v39 = vpop.permute.xlu0 %38
    %40 = vrot.lane.b32.xlu0 %v32, 4
    %v41 = vpop.permute.xlu0 %40
    %42 = vrot.lane.b32.xlu0 %v35, 4
    %v43 = vpop.permute.xlu0 %42
    %44 = vrot.lane.b32.xlu0 %v37, 4
    %v45 = vpop.permute.xlu0 %44
    %vm50 = vcmask 1045504
    %v51 = vrot.slane %v15, 2
    %v52 = vrot.slane %v16, 2
    %v53 = vsel %vm50, %v51, %v52
    %v54 = vrot.slane %v17, 2
    %v55 = vsel %vm50, %v52, %v54
    %v56 = vrot.slane %v18, 2
    %v57 = vrot.slane %v19, 2
    %v58 = vsel %vm50, %v56, %v57
    %v59 = vrot.slane %v20, 2
    %v60 = vsel %vm50, %v57, %v59
    %61 = vrot.lane.b32.xlu0 %v53, 8
    %v62 = vpop.permute.xlu0 %61
    %63 = vrot.lane.b32.xlu0 %v55, 8
    %v64 = vpop.permute.xlu0 %63
    %65 = vrot.lane.b32.xlu0 %v58, 8
    %v66 = vpop.permute.xlu0 %65
    %67 = vrot.lane.b32.xlu0 %v60, 8
    %v68 = vpop.permute.xlu0 %67
    %vm73 = vcmask 1044480
    %v74 = vrot.slane %v15, 3
    %v75 = vrot.slane %v16, 3
    %v76 = vsel %vm73, %v74, %v75
    %v77 = vrot.slane %v17, 3
    %v78 = vsel %vm73, %v75, %v77
    %v79 = vrot.slane %v18, 3
    %v80 = vrot.slane %v19, 3
    %v81 = vsel %vm73, %v79, %v80
    %v82 = vrot.slane %v20, 3
    %v83 = vsel %vm73, %v80, %v82
    %84 = vrot.lane.b32.xlu0 %v76, 12
    %v85 = vpop.permute.xlu0 %84
    %86 = vrot.lane.b32.xlu0 %v78, 12
    %v87 = vpop.permute.xlu0 %86
    %88 = vrot.lane.b32.xlu0 %v81, 12
    %v89 = vpop.permute.xlu0 %88
    %90 = vrot.lane.b32.xlu0 %v83, 12
    %v91 = vpop.permute.xlu0 %90
    %vm96 = vcmask 1043456
    %v97 = vrot.slane %v15, 4
    %v98 = vrot.slane %v16, 4
    %v99 = vsel %vm96, %v97, %v98
    %v100 = vrot.slane %v17, 4
    %v101 = vsel %vm96, %v98, %v100
    %v102 = vrot.slane %v18, 4
    %v103 = vrot.slane %v19, 4
    %v104 = vsel %vm96, %v102, %v103
    %v105 = vrot.slane %v20, 4
    %v106 = vsel %vm96, %v103, %v105
    %107 = vrot.lane.b32.xlu0 %v99, 16
    %v108 = vpop.permute.xlu0 %107
    %109 = vrot.lane.b32.xlu0 %v101, 16
    %v110 = vpop.permute.xlu0 %109
    %111 = vrot.lane.b32.xlu0 %v104, 16
    %v112 = vpop.permute.xlu0 %111
    %113 = vrot.lane.b32.xlu0 %v106, 16
    %v114 = vpop.permute.xlu0 %113
    %vm119 = vcmask 31744
    %v120 = vsel %vm119, %v15, %v39
    %v121 = vsel %vm119, %v16, %v41
    %v122 = vsel %vm119, %v18, %v43
    %v123 = vsel %vm119, %v19, %v45
    %vm124 = vcmask 64512
    %v125 = vsel %vm124, %v120, %v62
    %v126 = vsel %vm124, %v121, %v64
    %v127 = vsel %vm124, %v122, %v66
    %v128 = vsel %vm124, %v123, %v68
    %vm129 = vcmask 97280
    %v130 = vsel %vm129, %v125, %v85
    %v131 = vsel %vm129, %v126, %v87
    %v132 = vsel %vm129, %v127, %v89
    %v133 = vsel %vm129, %v128, %v91
    %vm134 = vcmask 130048
    %v135 = vsel %vm134, %v130, %v108
    %v136 = vsel %vm134, %v131, %v110
    %v137 = vsel %vm134, %v132, %v112
    %v138 = vsel %vm134, %v133, %v114
    %v139 = vld [vmem:[%s1] sm:$0xff]
    %v140 = vld [vmem:[%s1 + $0x8] sm:$0xff]
    %v141 = vld [vmem:[%s1 + $0x10] sm:$0xf]
    %v142 = vld [vmem:[%s2] sm:$0x1]
    %v144 = vlaneseq
    %v145 = vshrl.u32 %v144, 7
    %v146 = vsub.s32 0, %v145
    %v147 = vrot.slane %v142, %v146
    %vm149 = vcmask 162816
    %v151 = vsel %vm149, %v135, 0
    %v154 = vsel %vm149, %v136, 0
    %v157 = vsel %vm149, %v137, 0
    %v160 = vsel %vm149, %v138, 0
    %v163 = vsel %vm96, %v141, 0
    %165 = vmatprep.subr.mxu0 0.0
    %166 = vmatpush1.msra.mxu0 0.0
    %167 = vmatprep.subr.mxu0 0.0
    %168 = vmatpush1.msra.mxu0 0.0
    %169 = vmatprep.subr.mxu0 0.0
    %170 = vmatpush1.msra.mxu0 0.0
    %171 = vmatprep.subr.mxu0 0.0
    %172 = vmatpush1.msra.mxu0 0.0
    %173 = vmatprep.subr.mxu0 0.0
    %174 = vmatpush1.msra.mxu0 0.0
    %175 = vmatprep.subr.mxu0 0.0
    %176 = vmatpush1.msra.mxu0 0.0
    %177 = vmatprep.subr.mxu0 0.0
    %178 = vmatpush1.msra.mxu0 0.0
    %179 = vmatprep.subr.mxu0 0.0
    %180 = vmatpush1.msra.mxu0 0.0
    %181 = vmatprep.subr.mxu0 0.0
    %182 = vmatpush1.msra.mxu0 0.0
    %183 = vmatprep.subr.mxu0 0.0
    %184 = vmatpush1.msra.mxu0 0.0
    %185 = vmatprep.subr.mxu0 0.0
    %186 = vmatpush1.msra.mxu0 0.0
    %187 = vmatprep.subr.mxu0 0.0
    %188 = vmatpush1.msra.mxu0 0.0
    %189 = vmatprep.subr.mxu0 0.0
    %190 = vmatpush1.msra.mxu0 0.0
    %191 = vmatprep.subr.mxu0 0.0
    %192 = vmatpush1.msra.mxu0 %v163
    %193 = vmatprep.subr.mxu0 0.0
    %194 = vmatpush1.msra.mxu0 %v140
    %195 = vmatprep.subr.mxu0 0.0
    %196 = vmatpush1.msra.mxu0 %v139
    %197 = vmatprep.subr.mxu0 0.0
    %198 = vmatpush2.msra.mxu0 0.0
    %199 = vmatprep.subr.mxu0 0.0
    %200 = vmatpush2.msra.mxu0 0.0
    %201 = vmatprep.subr.mxu0 0.0
    %202 = vmatpush2.msra.mxu0 0.0
    %203 = vmatprep.subr.mxu0 0.0
    %204 = vmatpush2.msra.mxu0 0.0
    %205 = vmatprep.subr.mxu0 0.0
    %206 = vmatpush2.msra.mxu0 0.0
    %207 = vmatprep.subr.mxu0 0.0
    %208 = vmatpush2.msra.mxu0 0.0
    %209 = vmatprep.subr.mxu0 0.0
    %210 = vmatpush2.msra.mxu0 0.0
    %211 = vmatprep.subr.mxu0 0.0
    %212 = vmatpush2.msra.mxu0 0.0
    %213 = vmatprep.subr.mxu0 0.0
    %214 = vmatpush2.msra.mxu0 0.0
    %215 = vmatprep.subr.mxu0 0.0
    %216 = vmatpush2.msra.mxu0 0.0
    %217 = vmatprep.subr.mxu0 0.0
    %218 = vmatpush2.msra.mxu0 0.0
    %219 = vmatprep.subr.mxu0 0.0
    %220 = vmatpush2.msra.mxu0 0.0
    %221 = vmatprep.subr.mxu0 0.0
    %222 = vmatpush2.msra.mxu0 0.0
    %223 = vmatprep.subr.mxu0 0.0
    %224 = vmatpush2.msra.mxu0 0.0
    %225 = vmatprep.subr.mxu0 0.0
    %226 = vmatpush2.msra.mxu0 0.0
    %227 = vmatprep.subr.mxu0 0.0
    %228 = vmatpush2.msra.mxu0 0.0
    %229 = vmatprep.mubr.f32.mxu0 0.0
    %230 = vmatmul.mubr.f32.gmra.mxu0 %v151
    %v231 = vpop.f32.mrf.mxu0
    %v232 = vadd.f32 %v147, %v231
    %v233 = vpop.f32.mrf.mxu0
    %234 = vmatprep.mubr.f32.mxu0 0.0
    %235 = vmatmul.mubr.f32.gmra.mxu0 %v154
    %v236 = vpop.f32.mrf.mxu0
    %v237 = vadd.f32 %v147, %v236
    %v238 = vpop.f32.mrf.mxu0
    %239 = vmatprep.mubr.f32.mxu0 0.0
    %240 = vmatmul.mubr.f32.gmra.mxu0 %v157
    %v241 = vpop.f32.mrf.mxu0
    %v242 = vadd.f32 %v147, %v241
    %v243 = vpop.f32.mrf.mxu0
    %244 = vmatprep.mubr.f32.mxu0 0.0
    %245 = vmatmul.mubr.f32.gmra.mxu0 %v160
    %v246 = vpop.f32.mrf.mxu0
    %v247 = vadd.f32 %v147, %v246
    %v248 = vpop.f32.mrf.mxu0
    %249 = vdwg.mxu0
    %v250 = vmax.f32 %v232, 0.0
    %v251 = vmax.f32 %v237, 0.0
    %v252 = vmax.f32 %v242, 0.0
    %v253 = vmax.f32 %v247, 0.0
    %v254 = vlaneseq
    %v255 = vshrl.u32 %v254, 7
    %v256 = vadd.s32 %v255, 8
    %v257 = vadd.s32 %v255, 16
    %v258 = vadd.s32 %v255, 24
    %vm259 = vcmp.lt.s32.totalorder %v255, 0
    %v260 = vsub.s32 0, %v255
    %v261 = vsel %vm259, %v260, %v255
    %v262 = vshrl.u32 %v261, 4
    %v263 = vand.u32 %v261, 15
    %v264 = vsub.s32 0, %v263
    %v265 = vsel %vm259, %v264, %v263
    %vm266 = vcmp.lt.s32.totalorder %v256, 0
    %v267 = vsub.s32 0, %v256
    %v268 = vsel %vm266, %v267, %v256
    %v269 = vshrl.u32 %v268, 4
    %v270 = vand.u32 %v268, 15
    %v271 = vsub.s32 0, %v270
    %v272 = vsel %vm266, %v271, %v270
    %vm273 = vcmp.lt.s32.totalorder %v257, 0
    %v274 = vsub.s32 0, %v257
    %v275 = vsel %vm273, %v274, %v257
    %v276 = vshrl.u32 %v275, 4
    %v277 = vand.u32 %v275, 15
    %v278 = vsub.s32 0, %v277
    %v279 = vsel %vm273, %v278, %v277
    %vm280 = vcmp.lt.s32.totalorder %v258, 0
    %v281 = vsub.s32 0, %v258
    %v282 = vsel %vm280, %v281, %v258
    %v283 = vshrl.u32 %v282, 4
    %v284 = vand.u32 %v282, 15
    %v285 = vsub.s32 0, %v284
    %v286 = vsel %vm280, %v285, %v284
    %vm287 = vcmp.ne.s32.totalorder %v265, 0
    %vm288 = vcmp.ne.s32.totalorder %v272, 0
    %vm289 = vcmp.ne.s32.totalorder %v279, 0
    %vm290 = vcmp.ne.s32.totalorder %v286, 0
    %vm291 = vcmp.lt.s32.totalorder %v265, 0
    %vm292 = vcmp.lt.s32.totalorder %v272, 0
    %vm293 = vcmp.lt.s32.totalorder %v279, 0
    %vm294 = vcmp.lt.s32.totalorder %v286, 0
    %vm295 = vmand %vm291, %vm287
    %vm296 = vmand %vm292, %vm288
    %vm297 = vmand %vm293, %vm289
    %vm298 = vmand %vm294, %vm290
    %v299 = vadd.s32 %v265, 16
    %v300 = vadd.s32 %v272, 16
    %v301 = vadd.s32 %v279, 16
    %v302 = vadd.s32 %v286, 16
    %v303 = vsel %vm295, %v299, %v265
    %v304 = vsel %vm296, %v300, %v272
    %v305 = vsel %vm297, %v301, %v279
    %v306 = vsel %vm298, %v302, %v286
    %vm307 = vcmp.lt.s32.totalorder %v303, 12
    %vm308 = vcmp.lt.s32.totalorder %v304, 12
    %vm309 = vcmp.lt.s32.totalorder %v305, 12
    %vm310 = vcmp.lt.s32.totalorder %v306, 12
    %v311 = vsel %vm307, 1, 0
    %v312 = vsel %vm308, 1, 0
    %v313 = vsel %vm309, 1, 0
    %v314 = vsel %vm310, 1, 0
    %vm315 = vcmp.eq.s32.totalorder %v311, 1
    %vm316 = vcmp.eq.s32.totalorder %v312, 1
    %vm317 = vcmp.eq.s32.totalorder %v313, 1
    %vm318 = vcmp.eq.s32.totalorder %v314, 1
    %v319 = vsel %vm315, %v250, 0.0
    %v320 = vsel %vm316, %v251, 0.0
    %v321 = vsel %vm317, %v252, 0.0
    %v322 = vsel %vm318, %v253, 0.0
    %v323 = vsel %vm124, %v319, -inf
    %v324 = vsel %vm124, %v320, -inf
    %v325 = vmax.f32 %v323, %v324
    %v326 = vrot.slane %v325, 4
    %v327 = vmax.f32 %v325, %v326
    %v328 = vrot.slane %v327, 2
    %v329 = vmax.f32 %v327, %v328
    %v330 = vrot.slane %v329, 1
    %v331 = vmax.f32 %v329, %v330
    %v332 = vsel %vm124, %v321, -inf
    %v333 = vsel %vm124, %v322, -inf
    %v334 = vmax.f32 %v332, %v333
    %v335 = vrot.slane %v334, 4
    %v336 = vmax.f32 %v334, %v335
    %v337 = vrot.slane %v336, 2
    %v338 = vmax.f32 %v336, %v337
    %v339 = vrot.slane %v338, 1
    %v340 = vmax.f32 %v338, %v339
    %vm343 = vcmask 1041409
    %v344 = vsel %vm343, %v340, %v331
    %vm346 = vcmask 58368
    %347 = vst.msk [vmem:[#allocation2] sm:$0x3] %vm346, %v344
    // Predicated region
    $region14: #{tpu_custom_call.1} parent=1 // pred_check
      _
    $region15: #{tpu_custom_call.1} parent=1 // pred_check_branch
      %349 = sbr.rel (0) target = $region17
    $region16: #{tpu_custom_call.1} parent=1 // pred_region
      %s351 = ssub.s32 32, 32
      %352 = vsyncadd [#allocation3], %s351
      %s354 = sshll.u32 [#allocation2], 4
      %s355 = int_to_ptr.vmem [resolvable:$true] %s354
      %357 = dma.vmem_to_hbm [thread:$0]  %s355, 32, %s3, [#allocation3]
    $region17: #{tpu_custom_call.1} parent=1 // pred_fallthru
      _
    // Predicated region
    $region18: #{tpu_custom_call.1} parent=1 // pred_check
      _
    $region19: #{tpu_custom_call.1} parent=1 // pred_check_branch
      %359 = sbr.rel (0) target = $region21
    $region20: #{tpu_custom_call.1} parent=1 // pred_region
      %360 = dma.done [#allocation3], 32
    $region21: #{tpu_custom_call.1} parent=1 // pred_fallthru
      _
    %361 = vsyncpa [#allocation3], 1

</llo_original>
